<compile_context>
chip_gen: v5e
topology: v5e:2x2
jax: 0.10.0
libtpu: 0.0.40
codegen_flags: <defaults>
</compile_context>

<pallas_src>
import jax
import jax.numpy as jnp
from jax.experimental import pallas as pl
from jax.experimental.pallas import tpu as pltpu

LEAKY_SLOPE = 0.01   # nn.LeakyReLU default
BN_EPS = 1e-5        # nn.BatchNorm1d default
LANE = 128           # TPU lane width (lane-dense output)


def _leaky_relu(v):
    # slope < 1  =>  max(v, slope*v) == leaky_relu(v); one vmax instead of cmp+select
    return jnp.maximum(v, LEAKY_SLOPE * v)


def fused_ff_kernel(x_ref, w1_ref, w23_ref, w4_ref, bias_ref, out_ref):
    """Both branches fused: 3x (Linear+LeakyReLU) -> BatchNorm1d -> Linear.

    Hidden feature axis (HP = 2*H lanes) holds [branch1 hidden | branch2 hidden].
    Layers 2/3 are block-diagonal so branches never mix.  BatchNorm's affine is
    pre-folded into w4/b4.  Output is lane-dense (B, 128): lane 0 = branch1,
    lane 1 = branch2, remaining lanes are exact zeros.
    """
    hp = w1_ref.shape[1]
    x = x_ref[...]
    bias = bias_ref[...]                       # (4, OUT); rows 0..2 use lanes [:hp]

    h = _leaky_relu(
        jnp.dot(x, w1_ref[...], preferred_element_type=jnp.float32) + bias[0:1, :hp])
    h = _leaky_relu(
        jnp.dot(h, w23_ref[0], preferred_element_type=jnp.float32) + bias[1:2, :hp])
    h = _leaky_relu(
        jnp.dot(h, w23_ref[1], preferred_element_type=jnp.float32) + bias[2:3, :hp])

    # BatchNorm1d (training mode): biased batch statistics over the batch axis.
    # gamma/beta already folded into w4/b4, so only center+scale here.
    mu = jnp.mean(h, axis=0, keepdims=True)
    centered = h - mu
    var = jnp.mean(centered * centered, axis=0, keepdims=True)
    h = centered * jax.lax.rsqrt(var + BN_EPS)

    out_ref[...] = (
        jnp.dot(h, w4_ref[...], preferred_element_type=jnp.float32) + bias[3:4, :])


def fused_feedforward_call(x, packed):
    """Single pallas_call computing both branches. Returns (out1, out2), each [B,1]."""
    B = x.shape[0]
    w1, w23, w4, bias = packed
    args = (x, w1, w23, w4, bias)

    out_pad = w4.shape[1]
    vmem = pl.BlockSpec(memory_space=pltpu.MemorySpace.VMEM)

    hp = w1.shape[1]
    flops = 2 * B * (x.shape[1] * hp + 2 * hp * hp + hp * out_pad)
    bytes_accessed = (sum(int(a.size) * a.dtype.itemsize for a in args)
                      + B * out_pad * 4)

    out = pl.pallas_call(
        fused_ff_kernel,
        out_shape=jax.ShapeDtypeStruct((B, out_pad), jnp.float32),
        in_specs=[vmem] * len(args),
        out_specs=vmem,
        cost_estimate=pl.CostEstimate(
            flops=flops,
            transcendentals=hp,                 # one rsqrt per hidden column
            bytes_accessed=bytes_accessed),
    )(*args)

    both = out[:, :2]                           # single narrow slice, then split
    return both[:, 0:1], both[:, 1:2]


def init_linear(key, fan_in, fan_out):
    """PyTorch nn.Linear default init: U(-1/sqrt(fan_in), 1/sqrt(fan_in))."""
    kw, kb = jax.random.split(key)
    bound = 1.0 / jnp.sqrt(jnp.float32(fan_in))
    # stored as [in, out] so the kernel does x @ W
    w = jax.random.uniform(kw, (fan_in, fan_out), jnp.float32, -bound, bound)
    b = jax.random.uniform(kb, (1, fan_out), jnp.float32, -bound, bound)
    return w, b


def init_branch(key, latent_dim, hidden_size):
    k1, k2, k3, k4 = jax.random.split(key, 4)
    w1, b1 = init_linear(k1, latent_dim, hidden_size)
    w2, b2 = init_linear(k2, hidden_size, hidden_size)
    w3, b3 = init_linear(k3, hidden_size, hidden_size)
    gamma = jnp.ones((1, hidden_size), jnp.float32)   # BatchNorm1d weight (default)
    beta = jnp.zeros((1, hidden_size), jnp.float32)   # BatchNorm1d bias (default)
    w4, b4 = init_linear(k4, hidden_size, 1)
    return (w1, b1, w2, b2, w3, b3, gamma, beta, w4, b4)


def pack_params(params1, params2, out_lanes=LANE):
    """Pack both branches into one compact parameter set (done once at init).

    Hidden layout (HP = 2*H lanes, no padding): [branch1 | branch2].
    Layers 2/3 are block-diagonal; BatchNorm affine is folded into layer 4:
        w4' = gamma.T * w4,  b4' = b4 + beta @ w4.
    Returns 5 buffers: w1 (L,HP), w23 (2,HP,HP), w4 (HP,OUT), bias (4,OUT).
    """
    (w1a, b1a, w2a, b2a, w3a, b3a, ga, bea, w4a, b4a) = params1
    (w1b, b1b, w2b, b2b, w3b, b3b, gb, beb, w4b, b4b) = params2
    H = w1a.shape[1]
    HP = 2 * H
    OUT = out_lanes

    def cat_cols(a, b):
        return jnp.concatenate([a, b], axis=1)          # (rows, HP)

    def block_diag(a, b):
        out = jnp.zeros((HP, HP), jnp.float32)
        return out.at[:H, :H].set(a).at[H:, H:].set(b)

    w1 = cat_cols(w1a, w1b)                              # (L, HP)
    w23 = jnp.stack([block_diag(w2a, w2b),
                     block_diag(w3a, w3b)], axis=0)      # (2, HP, HP)

    # Fold BatchNorm affine into layer 4 (exact: gamma/beta are constants).
    w4a_f = w4a * ga.T                                   # (H, 1)
    w4b_f = w4b * gb.T
    b4a_f = b4a + bea @ w4a                              # (1, 1)
    b4b_f = b4b + beb @ w4b

    w4 = (jnp.zeros((HP, OUT), jnp.float32)
          .at[:H, 0:1].set(w4a_f)
          .at[H:, 1:2].set(w4b_f))

    bias = jnp.zeros((4, OUT), jnp.float32)
    bias = bias.at[0, :HP].set(cat_cols(b1a, b1b)[0])
    bias = bias.at[1, :HP].set(cat_cols(b2a, b2b)[0])
    bias = bias.at[2, :HP].set(cat_cols(b3a, b3b)[0])
    bias = bias.at[3, 0].set(b4a_f[0, 0]).at[3, 1].set(b4b_f[0, 0])

    return (w1, w23, w4, bias)


@jax.jit
def feedforward(x, packed):
    return fused_feedforward_call(x, packed)


def reference(x, params):
    """Pure-JAX reference of one branch (sanity check)."""
    w1, b1, w2, b2, w3, b3, gamma, beta, w4, b4 = params
    lrelu = lambda v: jnp.where(v > 0, v, LEAKY_SLOPE * v)
    h = lrelu(x @ w1 + b1)
    h = lrelu(h @ w2 + b2)
    h = lrelu(h @ w3 + b3)
    mu = jnp.mean(h, axis=0, keepdims=True)
    var = jnp.mean((h - mu) ** 2, axis=0, keepdims=True)
    h = (h - mu) / jnp.sqrt(var + BN_EPS) * gamma + beta
    return h @ w4 + b4


if __name__ == "__main__":
    B, LATENT_DIM, HIDDEN = 8, 16, 32

    root = jax.random.PRNGKey(0)
    kx, kp1, kp2, kg1, kb1, kg2, kb2 = jax.random.split(root, 7)

    x = jax.random.normal(kx, (B, LATENT_DIM), jnp.float32)
    params1 = init_branch(kp1, LATENT_DIM, HIDDEN)
    params2 = init_branch(kp2, LATENT_DIM, HIDDEN)

    # Use non-default gamma/beta in the test so the BN-affine -> layer-4 fold is
    # actually exercised (PyTorch defaults are ones/zeros, which would make the
    # fold a numerical no-op).
    params1 = params1[:6] + (1.0 + 0.1 * jax.random.normal(kg1, (1, HIDDEN)),
                             0.1 * jax.random.normal(kb1, (1, HIDDEN))) + params1[8:]
    params2 = params2[:6] + (1.0 + 0.1 * jax.random.normal(kg2, (1, HIDDEN)),
                             0.1 * jax.random.normal(kb2, (1, HIDDEN))) + params2[8:]

    # Pack/pad both branches once at init time (not per forward call).
    packed = jax.tree_util.tree_map(jax.block_until_ready,
                                    pack_params(params1, params2))

    out1, out2 = feedforward(x, packed)
    out1 = jax.block_until_ready(out1)
    out2 = jax.block_until_ready(out2)

    assert out1.shape == (B, 1) and out2.shape == (B, 1)

    ref1 = reference(x, params1)
    ref2 = reference(x, params2)
    assert jnp.allclose(out1, ref1, atol=1e-4, rtol=1e-4)
    assert jnp.allclose(out2, ref2, atol=1e-4, rtol=1e-4)

    # TODO(synk): BatchNorm1d running_mean/running_var updates (eval mode) are
    # not modeled; kernel implements training-mode batch statistics only.
    print("KERNEL_OK")
</pallas_src>

<mosaic_0001>
module attributes {stable_mosaic.version = 11 : i64} {
  func.func @fused_ff_kernel(%arg0: memref<8x16xf32, #tpu.memory_space<vmem>>, %arg1: memref<16x64xf32, #tpu.memory_space<vmem>>, %arg2: memref<2x64x64xf32, #tpu.memory_space<vmem>>, %arg3: memref<64x128xf32, #tpu.memory_space<vmem>>, %arg4: memref<4x128xf32, #tpu.memory_space<vmem>>, %arg5: memref<8x128xf32, #tpu.memory_space<vmem>>) attributes {dimension_semantics = [], scalar_prefetch = 0 : i64, scratch_operands = 0 : i64, tpu.core_type = #tpu.core_type<tc>} {
    %c0 = arith.constant 0 : index
    %c0_0 = arith.constant 0 : index
    %0 = vector.load %arg0[%c0, %c0_0] : memref<8x16xf32, #tpu.memory_space<vmem>>, vector<8x16xf32>
    %c0_1 = arith.constant 0 : index
    %c0_2 = arith.constant 0 : index
    %1 = vector.load %arg4[%c0_1, %c0_2] : memref<4x128xf32, #tpu.memory_space<vmem>>, vector<4x128xf32>
    %c0_3 = arith.constant 0 : index
    %c0_4 = arith.constant 0 : index
    %2 = vector.load %arg1[%c0_3, %c0_4] : memref<16x64xf32, #tpu.memory_space<vmem>>, vector<16x64xf32>
    %cst = arith.constant dense<0.000000e+00> : vector<8x64xf32>
    %3 = tpu.matmul %0, %2, %cst {dimension_numbers = #tpu.dot_dimension_numbers<[1], [0], [0], [1], [0, 0, 1, 1], [], []>} : vector<8x16xf32>, vector<16x64xf32>, vector<8x64xf32> -> vector<8x64xf32>
    %4 = vector.extract_strided_slice %1 {offsets = [0, 0], sizes = [1, 64], strides = [1, 1]} : vector<4x128xf32> to vector<1x64xf32>
    %5 = vector.broadcast %4 : vector<1x64xf32> to vector<8x64xf32>
    %6 = arith.addf %3, %5 : vector<8x64xf32>
    %cst_5 = arith.constant 0.00999999977 : f32
    %7 = vector.broadcast %cst_5 : f32 to vector<8x64xf32>
    %8 = arith.mulf %7, %6 : vector<8x64xf32>
    %9 = arith.maximumf %6, %8 : vector<8x64xf32>
    %c0_6 = arith.constant 0 : index
    %c0_7 = arith.constant 0 : index
    %c0_8 = arith.constant 0 : index
    %10 = vector.load %arg2[%c0_6, %c0_7, %c0_8] : memref<2x64x64xf32, #tpu.memory_space<vmem>>, vector<1x64x64xf32>
    %11 = vector.shape_cast %10 : vector<1x64x64xf32> to vector<64x64xf32>
    %cst_9 = arith.constant dense<0.000000e+00> : vector<8x64xf32>
    %12 = tpu.matmul %9, %11, %cst_9 {dimension_numbers = #tpu.dot_dimension_numbers<[1], [0], [0], [1], [0, 0, 1, 1], [], []>} : vector<8x64xf32>, vector<64x64xf32>, vector<8x64xf32> -> vector<8x64xf32>
    %13 = vector.extract_strided_slice %1 {offsets = [1, 0], sizes = [1, 64], strides = [1, 1]} : vector<4x128xf32> to vector<1x64xf32>
    %14 = vector.broadcast %13 : vector<1x64xf32> to vector<8x64xf32>
    %15 = arith.addf %12, %14 : vector<8x64xf32>
    %cst_10 = arith.constant 0.00999999977 : f32
    %16 = vector.broadcast %cst_10 : f32 to vector<8x64xf32>
    %17 = arith.mulf %16, %15 : vector<8x64xf32>
    %18 = arith.maximumf %15, %17 : vector<8x64xf32>
    %c1 = arith.constant 1 : index
    %c0_11 = arith.constant 0 : index
    %c0_12 = arith.constant 0 : index
    %19 = vector.load %arg2[%c1, %c0_11, %c0_12] : memref<2x64x64xf32, #tpu.memory_space<vmem>>, vector<1x64x64xf32>
    %20 = vector.shape_cast %19 : vector<1x64x64xf32> to vector<64x64xf32>
    %cst_13 = arith.constant dense<0.000000e+00> : vector<8x64xf32>
    %21 = tpu.matmul %18, %20, %cst_13 {dimension_numbers = #tpu.dot_dimension_numbers<[1], [0], [0], [1], [0, 0, 1, 1], [], []>} : vector<8x64xf32>, vector<64x64xf32>, vector<8x64xf32> -> vector<8x64xf32>
    %22 = vector.extract_strided_slice %1 {offsets = [2, 0], sizes = [1, 64], strides = [1, 1]} : vector<4x128xf32> to vector<1x64xf32>
    %23 = vector.broadcast %22 : vector<1x64xf32> to vector<8x64xf32>
    %24 = arith.addf %21, %23 : vector<8x64xf32>
    %cst_14 = arith.constant 0.00999999977 : f32
    %25 = vector.broadcast %cst_14 : f32 to vector<8x64xf32>
    %26 = arith.mulf %25, %24 : vector<8x64xf32>
    %27 = arith.maximumf %24, %26 : vector<8x64xf32>
    %cst_15 = arith.constant dense<0.000000e+00> : vector<64xf32>
    %28 = vector.multi_reduction <add>, %27, %cst_15 [0] : vector<8x64xf32> to vector<64xf32>
    %29 = vector.shape_cast %28 : vector<64xf32> to vector<1x64xf32>
    %cst_16 = arith.constant 8.000000e+00 : f32
    %30 = vector.broadcast %cst_16 : f32 to vector<1x64xf32>
    %31 = arith.divf %29, %30 : vector<1x64xf32>
    %32 = vector.broadcast %31 : vector<1x64xf32> to vector<8x64xf32>
    %33 = arith.subf %27, %32 : vector<8x64xf32>
    %34 = arith.mulf %33, %33 : vector<8x64xf32>
    %cst_17 = arith.constant dense<0.000000e+00> : vector<64xf32>
    %35 = vector.multi_reduction <add>, %34, %cst_17 [0] : vector<8x64xf32> to vector<64xf32>
    %36 = vector.shape_cast %35 : vector<64xf32> to vector<1x64xf32>
    %cst_18 = arith.constant 8.000000e+00 : f32
    %37 = vector.broadcast %cst_18 : f32 to vector<1x64xf32>
    %38 = arith.divf %36, %37 : vector<1x64xf32>
    %cst_19 = arith.constant 9.99999974E-6 : f32
    %39 = vector.broadcast %cst_19 : f32 to vector<1x64xf32>
    %40 = arith.addf %38, %39 : vector<1x64xf32>
    %41 = math.rsqrt %40 : vector<1x64xf32>
    %42 = vector.broadcast %41 : vector<1x64xf32> to vector<8x64xf32>
    %43 = arith.mulf %33, %42 : vector<8x64xf32>
    %c0_20 = arith.constant 0 : index
    %c0_21 = arith.constant 0 : index
    %44 = vector.load %arg3[%c0_20, %c0_21] : memref<64x128xf32, #tpu.memory_space<vmem>>, vector<64x128xf32>
    %cst_22 = arith.constant dense<0.000000e+00> : vector<8x128xf32>
    %45 = tpu.matmul %43, %44, %cst_22 {dimension_numbers = #tpu.dot_dimension_numbers<[1], [0], [0], [1], [0, 0, 1, 1], [], []>} : vector<8x64xf32>, vector<64x128xf32>, vector<8x128xf32> -> vector<8x128xf32>
    %46 = vector.extract_strided_slice %1 {offsets = [3, 0], sizes = [1, 128], strides = [1, 1]} : vector<4x128xf32> to vector<1x128xf32>
    %47 = vector.broadcast %46 : vector<1x128xf32> to vector<8x128xf32>
    %48 = arith.addf %45, %47 : vector<8x128xf32>
    %c0_23 = arith.constant 0 : index
    %c0_24 = arith.constant 0 : index
    %49 = vector.load %arg5[%c0_23, %c0_24] : memref<8x128xf32, #tpu.memory_space<vmem>>, vector<8x128xf32>
    tpu.vector_store %arg5[%c0_23, %c0_24], %48 {strides = array<i32>} : memref<8x128xf32, #tpu.memory_space<vmem>>, vector<8x128xf32>,
    return
  }
}

</mosaic_0001>

<llo_original>
// kernel: feedforward.1
$region0: #{feedforward.1}
  #allocation0 [shape = 'u32[]', space=smem, size = 0x4, offset = 0x4, fixed_abs, tag = 'smem constant byte address 0x4 - core index']
  #allocation1 [shape = 'u32[72,128]{1,0:T(1,128)}', space=vmem, size = 0x9000, scoped, tag = 'internal scratch']
  %s0 = inlined_call_operand.hbm [shape: f32[8,16], index: 0, kind: input, shape index: {}]
  %s1 = inlined_call_operand.hbm [shape: f32[16,64], index: 1, kind: input, shape index: {}]
  %s2 = inlined_call_operand.hbm [shape: f32[2,64,64], index: 2, kind: input, shape index: {}]
  %s3 = inlined_call_operand.hbm [shape: f32[64,128], index: 3, kind: input, shape index: {}]
  %s4 = inlined_call_operand.hbm [shape: f32[4,128], index: 4, kind: input, shape index: {}]
  %s5 = inlined_call_operand.vmem [shape: f32[8,128], index: 5, kind: output, shape index: {}]
  %s6 = sld [smem:[#allocation0]]
  $region50: #{feedforward.1} parent=0
    _
  %s8 = ssub.s32 1, %s6
  %s9 = scalar_select 0, %s8, %s6
  $region1: #{feedforward.1} parent=0
    #allocation2 [shape = 'u8[4096]{0}', space=vmem, size = 0x1000, scoped, tag = 'input window, operand 0, single buffered']
    #allocation3 [shape = 's32[1]{0}', space=sflag, size = 0x4, scoped, tag = 'scoped memory for feedforward.1']
    #allocation4 [shape = 'u8[8192]{0}', space=vmem, size = 0x2000, scoped, tag = 'input window, operand 1, single buffered']
    #allocation5 [shape = 's32[1]{0}', space=sflag, size = 0x4, scoped, tag = 'scoped memory for feedforward.1']
    #allocation6 [shape = 'u8[65536]{0}', space=vmem, size = 0x10000, scoped, tag = 'input window, operand 2, single buffered']
    #allocation7 [shape = 'u8[32768]{0}', space=vmem, size = 0x8000, scoped, tag = 'input window, operand 3, single buffered']
    #allocation8 [shape = 's32[1]{0}', space=sflag, size = 0x4, scoped, tag = 'scoped memory for feedforward.1']
    #allocation9 [shape = 'u8[2048]{0}', space=vmem, size = 0x800, scoped, tag = 'input window, operand 4, single buffered']
    %10 = vsyncpa [#allocation3], 0
    %11 = vsyncpa [#allocation5], 0
    %12 = vsyncpa [#allocation8], 0
    // Predicated region
    $region2: #{feedforward.1} parent=1 // pred_check
      _
    $region3: #{feedforward.1} parent=1 // pred_check_branch
      %14 = sbr.rel (0) target = $region5
    $region4: #{feedforward.1} parent=1 // pred_region
      %16 = vsyncadd [#allocation3], 0
      %s18 = sshll.u32 %s0, 4
      %s19 = int_to_ptr.hbm [resolvable:$true] %s18
      %s20 = sshll.u32 [#allocation2], 4
      %s21 = int_to_ptr.vmem [resolvable:$true] %s20
      %23 = dma.hbm_to_vmem [thread:$0]  %s19, 128, %s21, [#allocation3]
    $region5: #{feedforward.1} parent=1 // pred_fallthru
      _
    // Predicated region
    $region6: #{feedforward.1} parent=1 // pred_check
      _
    $region7: #{feedforward.1} parent=1 // pred_check_branch
      %25 = sbr.rel (0) target = $region9
    $region8: #{feedforward.1} parent=1 // pred_region
      %27 = vsyncadd [#allocation5], 0
      %s28 = sshll.u32 %s1, 4
      %s29 = int_to_ptr.hbm [resolvable:$true] %s28
      %s30 = sshll.u32 [#allocation4], 4
      %s31 = int_to_ptr.vmem [resolvable:$true] %s30
      %36 = dma.hbm_to_vmem [thread:$0]  %s29, 256, %s31, [#allocation5], 128, 128, 8
    $region9: #{feedforward.1} parent=1 // pred_fallthru
      _
    // Predicated region
    $region10: #{feedforward.1} parent=1 // pred_check
      _
    $region11: #{feedforward.1} parent=1 // pred_check_branch
      %38 = sbr.rel (0) target = $region13
    $region12: #{feedforward.1} parent=1 // pred_region
      %40 = vsyncadd [#allocation5], 0
      %s41 = sshll.u32 %s2, 4
      %s42 = int_to_ptr.hbm [resolvable:$true] %s41
      %s43 = sshll.u32 [#allocation6], 4
      %s44 = int_to_ptr.vmem [resolvable:$true] %s43
      %49 = dma.hbm_to_vmem [thread:$0]  %s42, 2048, %s44, [#allocation5], 128, 128, 8
    $region13: #{feedforward.1} parent=1 // pred_fallthru
      _
    // Predicated region
    $region14: #{feedforward.1} parent=1 // pred_check
      _
    $region15: #{feedforward.1} parent=1 // pred_check_branch
      %51 = sbr.rel (0) target = $region17
    $region16: #{feedforward.1} parent=1 // pred_region
      %53 = vsyncadd [#allocation8], 0
      %s54 = sshll.u32 %s3, 4
      %s55 = int_to_ptr.hbm [resolvable:$true] %s54
      %s56 = sshll.u32 [#allocation7], 4
      %s57 = int_to_ptr.vmem [resolvable:$true] %s56
      %62 = dma.hbm_to_vmem [thread:$0]  %s55, 1024, %s57, [#allocation8], 128, 128, 8
    $region17: #{feedforward.1} parent=1 // pred_fallthru
      _
    // Predicated region
    $region18: #{feedforward.1} parent=1 // pred_check
      _
    $region19: #{feedforward.1} parent=1 // pred_check_branch
      %64 = sbr.rel (0) target = $region21
    $region20: #{feedforward.1} parent=1 // pred_region
      %66 = vsyncadd [#allocation8], 0
      %s68 = sshll.u32 %s4, 4
      %s69 = int_to_ptr.hbm [resolvable:$true] %s68
      %s70 = sshll.u32 [#allocation9], 4
      %s71 = int_to_ptr.vmem [resolvable:$true] %s70
      %73 = dma.hbm_to_vmem [thread:$0]  %s69, 64, %s71, [#allocation8]
    $region21: #{feedforward.1} parent=1 // pred_fallthru
      _
    // Predicated region
    $region22: #{feedforward.1} parent=1 // pred_check
      _
    $region23: #{feedforward.1} parent=1 // pred_check_branch
      %75 = sbr.rel (0) target = $region25
    $region24: #{feedforward.1} parent=1 // pred_region
      %77 = dma.done [#allocation3], 128
    $region25: #{feedforward.1} parent=1 // pred_fallthru
      _
    // Predicated region
    $region26: #{feedforward.1} parent=1 // pred_check
      _
    $region27: #{feedforward.1} parent=1 // pred_check_branch
      %79 = sbr.rel (0) target = $region29
    $region28: #{feedforward.1} parent=1 // pred_region
      %81 = dma.done [#allocation5], 256
    $region29: #{feedforward.1} parent=1 // pred_fallthru
      _
    // Predicated region
    $region30: #{feedforward.1} parent=1 // pred_check
      _
    $region31: #{feedforward.1} parent=1 // pred_check_branch
      %83 = sbr.rel (0) target = $region33
    $region32: #{feedforward.1} parent=1 // pred_region
      %85 = dma.done [#allocation5], 2048
    $region33: #{feedforward.1} parent=1 // pred_fallthru
      _
    // Predicated region
    $region34: #{feedforward.1} parent=1 // pred_check
      _
    $region35: #{feedforward.1} parent=1 // pred_check_branch
      %87 = sbr.rel (0) target = $region37
    $region36: #{feedforward.1} parent=1 // pred_region
      %89 = dma.done [#allocation8], 1024
    $region37: #{feedforward.1} parent=1 // pred_fallthru
      _
    // Predicated region
    $region38: #{feedforward.1} parent=1 // pred_check
      _
    $region39: #{feedforward.1} parent=1 // pred_check_branch
      %91 = sbr.rel (0) target = $region41
    $region40: #{feedforward.1} parent=1 // pred_region
      %93 = dma.done [#allocation8], 64
    $region41: #{feedforward.1} parent=1 // pred_fallthru
      _
    %v94 = vld [vmem:[#allocation2] sm:$0xff]
    %v95 = vld [vmem:[#allocation9] sm:$0xf]
    %v96 = vld [vmem:[#allocation4] sm:$0xff]
    %v97 = vld [vmem:[#allocation4 + $0x8] sm:$0xff]
    %v98 = vperm.slane %v95, 0
    %vm99 = vcmask 130048
    %v101 = vsel %vm99, %v94, 0
    %103 = vmatpush.msra.mxu0 0.0
    %104 = vmatpush.msra.mxu0 0.0
    %105 = vmatpush.msra.mxu0 0.0
    %106 = vmatpush.msra.mxu0 0.0
    %107 = vmatpush.msra.mxu0 0.0
    %108 = vmatpush.msra.mxu0 0.0
    %109 = vmatpush.msra.mxu0 0.0
    %110 = vmatpush.msra.mxu0 0.0
    %111 = vmatpush.msra.mxu0 0.0
    %112 = vmatpush.msra.mxu0 0.0
    %113 = vmatpush.msra.mxu0 0.0
    %114 = vmatpush.msra.mxu0 0.0
    %115 = vmatpush.msra.mxu0 0.0
    %116 = vmatpush.msra.mxu0 0.0
    %117 = vmatpush.msra.mxu0 %v97
    %118 = vmatpush.msra.mxu0 %v96
    %119 = vmatmul.f32.gmra.mxu0 %v101
    %v120 = vpop.f32.mrf.mxu0
    %v121 = vadd.f32 %v98, %v120
    %122 = vdwg.mxu0
    %v123 = vmul.f32 %v121, 0.01
    %v124 = vmax.f32 %v121, %v123
    %v125 = vld [vmem:[#allocation6] sm:$0xff]
    %v126 = vld [vmem:[#allocation6 + $0x8] sm:$0xff]
    %v127 = vld [vmem:[#allocation6 + $0x10] sm:$0xff]
    %v128 = vld [vmem:[#allocation6 + $0x18] sm:$0xff]
    %v129 = vld [vmem:[#allocation6 + $0x20] sm:$0xff]
    %v130 = vld [vmem:[#allocation6 + $0x28] sm:$0xff]
    %v131 = vld [vmem:[#allocation6 + $0x30] sm:$0xff]
    %v132 = vld [vmem:[#allocation6 + $0x38] sm:$0xff]
    %v133 = vperm.slane %v95, 1
    %vm134 = vcmask 523264
    %v136 = vsel %vm134, %v124, 0
    %138 = vmatpush.msra.mxu0 0.0
    %139 = vmatpush.msra.mxu0 0.0
    %140 = vmatpush.msra.mxu0 0.0
    %141 = vmatpush.msra.mxu0 0.0
    %142 = vmatpush.msra.mxu0 0.0
    %143 = vmatpush.msra.mxu0 0.0
    %144 = vmatpush.msra.mxu0 0.0
    %145 = vmatpush.msra.mxu0 0.0
    %146 = vmatpush.msra.mxu0 %v132
    %147 = vmatpush.msra.mxu0 %v131
    %148 = vmatpush.msra.mxu0 %v130
    %149 = vmatpush.msra.mxu0 %v129
    %150 = vmatpush.msra.mxu0 %v128
    %151 = vmatpush.msra.mxu0 %v127
    %152 = vmatpush.msra.mxu0 %v126
    %153 = vmatpush.msra.mxu0 %v125
    %154 = vmatmul.f32.gmra.mxu0 %v136
    %v155 = vpop.f32.mrf.mxu0
    %v156 = vadd.f32 %v133, %v155
    %157 = vdwg.mxu0
    %v158 = vmul.f32 %v156, 0.01
    %v159 = vmax.f32 %v156, %v158
    %s160 = scalar_lea.vmem [#allocation6], 64
    %v161 = vld [vmem:[%s160] sm:$0xff]
    %v162 = vld [vmem:[%s160 + $0x8] sm:$0xff]
    %v163 = vld [vmem:[%s160 + $0x10] sm:$0xff]
    %v164 = vld [vmem:[%s160 + $0x18] sm:$0xff]
    %v165 = vld [vmem:[%s160 + $0x20] sm:$0xff]
    %v166 = vld [vmem:[%s160 + $0x28] sm:$0xff]
    %v167 = vld [vmem:[%s160 + $0x30] sm:$0xff]
    %v168 = vld [vmem:[%s160 + $0x38] sm:$0xff]
    %v169 = vperm.slane %v95, 2
    %v171 = vsel %vm134, %v159, 0
    %173 = vmatpush.msra.mxu0 0.0
    %174 = vmatpush.msra.mxu0 0.0
    %175 = vmatpush.msra.mxu0 0.0
    %176 = vmatpush.msra.mxu0 0.0
    %177 = vmatpush.msra.mxu0 0.0
    %178 = vmatpush.msra.mxu0 0.0
    %179 = vmatpush.msra.mxu0 0.0
    %180 = vmatpush.msra.mxu0 0.0
    %181 = vmatpush.msra.mxu0 %v168
    %182 = vmatpush.msra.mxu0 %v167
    %183 = vmatpush.msra.mxu0 %v166
    %184 = vmatpush.msra.mxu0 %v165
    %185 = vmatpush.msra.mxu0 %v164
    %186 = vmatpush.msra.mxu0 %v163
    %187 = vmatpush.msra.mxu0 %v162
    %188 = vmatpush.msra.mxu0 %v161
    %189 = vmatmul.f32.gmra.mxu0 %v171
    %v190 = vpop.f32.mrf.mxu0
    %v191 = vadd.f32 %v169, %v190
    %192 = vdwg.mxu0
    %v193 = vmul.f32 %v191, 0.01
    %v194 = vmax.f32 %v191, %v193
    %v195 = vsel %vm134, %v194, 0.0
    %v196 = vrot.slane %v195, 4
    %v197 = vadd.f32 %v195, %v196
    %v198 = vrot.slane %v197, 2
    %v199 = vadd.f32 %v197, %v198
    %v200 = vrot.slane %v199, 1
    %v201 = vadd.f32 %v199, %v200
    %v202 = vrcp.pop 8.0
    %v203 = vmul.f32 8.0, %v202
    %v204 = vsub.f32 1.0, %v203
    %v205 = vmul.f32 %v202, %v204
    %v206 = vadd.f32 %v202, %v205
    %vm207 = vweird.f32 %v202
    %v208 = vsel %vm207, %v202, %v206
    %v209 = vmul.f32 %v201, %v208
    %v210 = vsub.f32 %v194, %v209
    %v211 = vmul.f32 %v210, %v210
    %v212 = vsel %vm134, %v211, 0.0
    %v213 = vrot.slane %v212, 4
    %v214 = vadd.f32 %v212, %v213
    %v215 = vrot.slane %v214, 2
    %v216 = vadd.f32 %v214, %v215
    %v217 = vrot.slane %v216, 1
    %v218 = vadd.f32 %v216, %v217
    %v219 = vmul.f32 %v218, %v208
    %v220 = vadd.f32 %v219, 1e-05
    %v221 = vrsqrt.pop %v220
    %v222 = vmul.f32 %v221, %v220
    %v223 = vmul.f32 %v222, %v221
    %v224 = vmul.f32 0.5, %v223
    %v225 = vsub.f32 1.5, %v224
    %v226 = vmul.f32 %v221, %v225
    %vm227 = vweird.f32 %v220
    %vm228 = vweird.f32 %v221
    %vm229 = vmor %vm227, %vm228
    %v230 = vsel %vm229, %v221, %v226
    %v231 = vmul.f32 %v210, %v230
    %v232 = vld [vmem:[#allocation7] sm:$0xff]
    %v233 = vld [vmem:[#allocation7 + $0x8] sm:$0xff]
    %v234 = vld [vmem:[#allocation7 + $0x10] sm:$0xff]
    %v235 = vld [vmem:[#allocation7 + $0x18] sm:$0xff]
    %v236 = vld [vmem:[#allocation7 + $0x20] sm:$0xff]
    %v237 = vld [vmem:[#allocation7 + $0x28] sm:$0xff]
    %v238 = vld [vmem:[#allocation7 + $0x30] sm:$0xff]
    %v239 = vld [vmem:[#allocation7 + $0x38] sm:$0xff]
    %v240 = vperm.slane %v95, 3
    %v242 = vsel %vm134, %v231, 0
    %244 = vmatpush.msra.mxu0 0.0
    %245 = vmatpush.msra.mxu0 0.0
    %246 = vmatpush.msra.mxu0 0.0
    %247 = vmatpush.msra.mxu0 0.0
    %248 = vmatpush.msra.mxu0 0.0
    %249 = vmatpush.msra.mxu0 0.0
    %250 = vmatpush.msra.mxu0 0.0
    %251 = vmatpush.msra.mxu0 0.0
    %252 = vmatpush.msra.mxu0 %v239
    %253 = vmatpush.msra.mxu0 %v238
    %254 = vmatpush.msra.mxu0 %v237
    %255 = vmatpush.msra.mxu0 %v236
    %256 = vmatpush.msra.mxu0 %v235
    %257 = vmatpush.msra.mxu0 %v234
    %258 = vmatpush.msra.mxu0 %v233
    %259 = vmatpush.msra.mxu0 %v232
    %260 = vmatmul.f32.gmra.mxu0 %v242
    %v261 = vpop.f32.mrf.mxu0
    %v262 = vadd.f32 %v240, %v261
    %263 = vdwg.mxu0
    %264 = vst [vmem:[%s5] sm:$0xff] %v262
    // Predicated region
    $region42: #{feedforward.1} parent=1 // pred_check
      _
    $region43: #{feedforward.1} parent=1 // pred_check_branch
      %266 = sbr.rel (0) target = $region45
    $region44: #{feedforward.1} parent=1 // pred_region
      _
    $region45: #{feedforward.1} parent=1 // pred_fallthru
      _
    // Predicated region
    $region46: #{feedforward.1} parent=1 // pred_check
      _
    $region47: #{feedforward.1} parent=1 // pred_check_branch
      %268 = sbr.rel (0) target = $region49
    $region48: #{feedforward.1} parent=1 // pred_region
      _
    $region49: #{feedforward.1} parent=1 // pred_fallthru
      _
    %269 = vsyncpa [#allocation3], 1
    %270 = vsyncpa [#allocation5], 1
    %271 = vsyncpa [#allocation8], 1

</llo_original>
